<compile_context>
chip_gen: v7x
topology: tpu7x:2x2x1
jax: 0.10.0
libtpu: 0.0.40
codegen_flags: <defaults>
</compile_context>

<pallas_src>
import functools

import jax
import jax.numpy as jnp
from jax.experimental import pallas as pl
from jax.experimental.pallas import tpu as pltpu


def _round_up(a, b):
    return ((a + b - 1) // b) * b


def _pad_cols(m, width):
    n = width - m.shape[-1]
    if n <= 0:
        return m
    return jnp.concatenate([m, jnp.zeros(m.shape[:-1] + (n,), m.dtype)], axis=-1)


def _vmem_limit_bytes():
    # Per-generation VMEM budget: ~3/4 of physical, capped at 100 MiB
    # (-> ~96 MiB on v5e/v6e with 128 MiB VMEM, 48 MiB on v7x with 64 MiB).
    try:
        cap = pltpu.get_tpu_info().vmem_capacity_bytes
        return int(min(100 * 1024 * 1024, (cap * 3) // 4))
    except Exception:
        return 48 * 1024 * 1024


# --------------------------- kernel 1: node phase ----------------------------
def _node_table_kernel(x_ref, w_ref, tab_ref):
    """One fused bf16 MXU matmul: [proj | (skip) | s_src | s_trg] per node tile."""
    tab_ref[...] = jnp.dot(x_ref[...].astype(jnp.bfloat16), w_ref[...],
                           preferred_element_type=jnp.float32)


# --------------------------- kernel 2: edge phase ----------------------------
def _edge_aggregate_kernel(src_ref, trg_ref, tab_ref, skip_ref, bias_ref,
                           smax_ref, selT_ref, out_ref,
                           acc_num_ref, acc_den_ref, *,
                           hfp, nh, s_src_off, s_trg_off,
                           num_edges, edge_tile, num_nodes_padded):
    f32 = jnp.float32
    t = pl.program_id(0)

    @pl.when(t == 0)
    def _init():
        acc_num_ref[...] = jnp.zeros_like(acc_num_ref)
        acc_den_ref[...] = jnp.zeros_like(acc_den_ref)

    tab = tab_ref[...]                                   # (Np, Wtab) resident node table
    src = src_ref[...]                                   # (TE, 1) int32
    trg = trg_ref[...]                                   # (TE, 1) int32

    # ---- gather via one-hot MXU matmuls (no per-edge scalar loads) ----------
    node_iota = jax.lax.broadcasted_iota(jnp.int32, (edge_tile, num_nodes_padded), 1)
    gat_src = (src == node_iota).astype(f32)             # (TE, Np)
    gat_trg = (trg == node_iota).astype(f32)             # (TE, Np)
    src_rows = jnp.dot(gat_src, tab, preferred_element_type=f32)   # (TE, Wtab)
    trg_rows = jnp.dot(gat_trg, tab, preferred_element_type=f32)   # (TE, Wtab)

    eproj = src_rows[:, :hfp]                            # (TE, HFp)  128-aligned slices
    esrc = src_rows[:, s_src_off:s_src_off + nh]         # (TE, NH)
    etrg = trg_rows[:, s_trg_off:s_trg_off + nh]         # (TE, NH)

    # ---- per-edge attention logits (LeakyReLU + numerically safe exp) -------
    z = esrc + etrg
    z = jnp.where(z > 0.0, z, 0.2 * z)                   # LeakyReLU(0.2)
    # Per-target shift max(0, s_trg[trg] + max_n s_src) >= z for every incoming
    # edge of that node; it is constant per target, so it cancels exactly in
    # attn = ex / denom (softmax is per target node).
    shift = jnp.maximum(etrg + smax_ref[...], 0.0)
    ex = jnp.exp(z - shift)                              # (TE, NH), <= 1

    eid = t * edge_tile + jax.lax.broadcasted_iota(jnp.int32, (edge_tile, 1), 0)
    ex = jnp.where(eid < num_edges, ex, 0.0)             # zero out padded edges

    # head -> per-feature broadcast via tiny selector matmul
    attn_full = jnp.dot(ex, selT_ref[...], preferred_element_type=f32)  # (TE, HFp)
    weighted = eproj * attn_full                         # (TE, HFp)

    # ---- scatter-add via transposed one-hot MXU matmuls ---------------------
    acc_num_ref[...] += jnp.dot(gat_trg.T, weighted, preferred_element_type=f32)
    acc_den_ref[...] += jnp.dot(gat_trg.T, attn_full, preferred_element_type=f32)

    # ---- finalize: normalize + skip + bias + ELU -----------------------------
    @pl.when(t == pl.num_programs(0) - 1)
    def _finalize():
        out = acc_num_ref[...] / (acc_den_ref[...] + 1e-16)
        out = out + skip_ref[...] + bias_ref[...]
        out_ref[...] = jnp.where(out > 0.0, out, jnp.expm1(out))


# ------------------------------ JAX wrapper ----------------------------------
def gat_layer_imp3(x, edge_index, params, num_heads, num_out_features, *,
                   node_tile=256, edge_tile=256):
    """Forward pass of GATLayerImp3 (concat=True, bias, skip, ELU, eval mode)."""
    N, F_in = x.shape
    NH, F = num_heads, num_out_features
    HF = NH * F
    HFp = _round_up(HF, 128)
    E = edge_index.shape[1]
    identity_skip = (F_in == F)
    f32 = jnp.float32
    assert NH <= 128

    vlim = _vmem_limit_bytes()

    # --- tiling ----------------------------------------------------------------
    TN = min(node_tile, _round_up(N, 8))
    assert TN % 8 == 0
    Np = _round_up(N, TN)
    TE = min(edge_tile, _round_up(E, 8))
    assert TE % 8 == 0
    E_pad = _round_up(E, TE)

    # --- parameters / folded weights --------------------------------------------
    Wp = params["Wp"].astype(f32)                        # (F_in, HF)
    a_src = params["a_src"].reshape(HF).astype(f32)      # head-major flatten
    a_trg = params["a_trg"].reshape(HF).astype(f32)
    bias = _pad_cols(params["bias"].reshape(1, HF).astype(f32), HFp)

    head_of_col = jnp.arange(HF) // F
    selM = (head_of_col[:, None] == jnp.arange(NH)[None, :]).astype(f32)   # (HF, NH)
    A_src = selM * a_src[:, None]                        # fold scoring vec per head
    A_trg = selM * a_trg[:, None]
    col = jnp.arange(HFp)
    selT = ((col[None, :] // F == jnp.arange(NH)[:, None]) &
            (col[None, :] < HF)).astype(f32)             # (NH, HFp) head->feat broadcast

    # Fused, lane-aligned weight layout: [Wp | (Wskip) | Wp@A_src | Wp@A_trg],
    # each block padded to a 128-lane boundary so in-kernel slices are aligned.
    blocks = [_pad_cols(Wp, HFp)]
    if not identity_skip:
        blocks.append(_pad_cols(params["Wskip"].astype(f32), HFp))
    blocks.append(_pad_cols(Wp @ A_src, 128))
    blocks.append(_pad_cols(Wp @ A_trg, 128))
    wcat = jnp.concatenate(blocks, axis=1)
    Wtab = wcat.shape[1]
    skip_off = HFp
    s_src_off = HFp if identity_skip else 2 * HFp
    s_trg_off = s_src_off + 128
    wcat_bf16 = wcat.astype(jnp.bfloat16)

    # --- padded node features ----------------------------------------------------
    x32 = x.astype(f32)
    if Np > N:
        x32 = jnp.concatenate([x32, jnp.zeros((Np - N, F_in), f32)], axis=0)

    # --- kernel 1: node-tiled fused projection + scores (single packed output) ---
    nodetab = pl.pallas_call(
        _node_table_kernel,
        grid=(Np // TN,),
        in_specs=[pl.BlockSpec((TN, F_in), lambda i: (i, 0)),
                  pl.BlockSpec((F_in, Wtab), lambda i: (0, 0))],
        out_specs=pl.BlockSpec((TN, Wtab), lambda i: (i, 0)),
        out_shape=jax.ShapeDtypeStruct((Np, Wtab), f32),
        compiler_params=pltpu.CompilerParams(
            dimension_semantics=("parallel",),
            vmem_limit_bytes=vlim),
    )(x32, wcat_bf16)

    # Per-head max of source scores over real nodes -> per-target softmax shift.
    smax = jnp.max(nodetab[:N, s_src_off:s_src_off + NH], axis=0, keepdims=True)

    if identity_skip:
        # TODO(synk): add the identity skip from the (N, F_in) features in-kernel
        #             instead of materializing this tiled (N, HF) copy.
        skip = _pad_cols(jnp.tile(x32, (1, NH)), HFp)
    else:
        skip = nodetab[:, skip_off:skip_off + HFp]

    # --- kernel 2: edge-tiled one-hot gather / softmax / scatter ------------------
    src = edge_index[0].astype(jnp.int32)
    trg = edge_index[1].astype(jnp.int32)
    if E_pad > E:
        pad = jnp.zeros((E_pad - E,), jnp.int32)
        src = jnp.concatenate([src, pad])
        trg = jnp.concatenate([trg, pad])
    src = src.reshape(E_pad, 1)
    trg = trg.reshape(E_pad, 1)

    kernel = functools.partial(
        _edge_aggregate_kernel, hfp=HFp, nh=NH,
        s_src_off=s_src_off, s_trg_off=s_trg_off,
        num_edges=E, edge_tile=TE, num_nodes_padded=Np)

    out_pad = pl.pallas_call(
        kernel,
        grid=(E_pad // TE,),
        in_specs=[pl.BlockSpec((TE, 1), lambda t: (t, 0)),      # src ids (streamed)
                  pl.BlockSpec((TE, 1), lambda t: (t, 0)),      # trg ids (streamed)
                  pl.BlockSpec((Np, Wtab), lambda t: (0, 0)),   # node table (resident)
                  pl.BlockSpec((Np, HFp), lambda t: (0, 0)),    # skip (resident)
                  pl.BlockSpec((1, HFp), lambda t: (0, 0)),     # bias
                  pl.BlockSpec((1, NH), lambda t: (0, 0)),      # per-head s_src max
                  pl.BlockSpec((NH, HFp), lambda t: (0, 0))],   # head->feature selector
        out_specs=pl.BlockSpec((Np, HFp), lambda t: (0, 0)),
        out_shape=jax.ShapeDtypeStruct((Np, HFp), f32),
        scratch_shapes=[pltpu.VMEM((Np, HFp), f32),   # numerator accumulator
                        pltpu.VMEM((Np, HFp), f32)],  # denominator accumulator
        compiler_params=pltpu.CompilerParams(
            dimension_semantics=("arbitrary",),
            vmem_limit_bytes=vlim),
    )(src, trg, nodetab, skip, bias, smax, selT)

    return out_pad[:N, :HF], edge_index


# --------------------------- pure-JAX reference ------------------------------
def gat_reference(x, edge_index, params, NH, F, *, match_kernel_precision=False):
    """Eval-mode forward of GATLayerImp3 (concat=True, skip, bias, ELU)."""
    N, F_in = x.shape
    HF = NH * F
    f32 = jnp.float32
    src, trg = edge_index[0], edge_index[1]
    identity_skip = (F_in == F)
    Wp = params["Wp"].astype(f32)
    a_src_hf = params["a_src"].reshape(HF).astype(f32)
    a_trg_hf = params["a_trg"].reshape(HF).astype(f32)
    xf = x.astype(f32)

    if match_kernel_precision:
        # Replicate the kernel's bf16 fused matmul (proj / skip / folded scores).
        def mm(a, b):
            return jnp.dot(a.astype(jnp.bfloat16), b.astype(jnp.bfloat16),
                           preferred_element_type=f32)
        head = jnp.arange(HF) // F
        selM = (head[:, None] == jnp.arange(NH)[None, :]).astype(f32)
        proj = mm(xf, Wp).reshape(N, NH, F)
        s_src = mm(xf, Wp @ (selM * a_src_hf[:, None]))
        s_trg = mm(xf, Wp @ (selM * a_trg_hf[:, None]))
        skip = (jnp.tile(xf, (1, NH)) if identity_skip
                else mm(xf, params["Wskip"].astype(f32)))
    else:
        proj = (xf @ Wp).reshape(N, NH, F)
        s_src = (proj * params["a_src"].reshape(1, NH, F).astype(f32)).sum(-1)
        s_trg = (proj * params["a_trg"].reshape(1, NH, F).astype(f32)).sum(-1)
        skip = (jnp.tile(xf, (1, NH)) if identity_skip
                else xf @ params["Wskip"].astype(f32))

    sc = s_src[src] + s_trg[trg]                       # (E, NH)
    sc = jnp.where(sc > 0, sc, 0.2 * sc)               # LeakyReLU(0.2)
    sc = sc - sc.max()                                 # global shift (PyTorch semantics)
    ex = jnp.exp(sc)
    den = jax.ops.segment_sum(ex, trg, num_segments=N)
    attn = ex / (den[trg] + 1e-16)
    w = proj[src] * attn[..., None]
    out = jax.ops.segment_sum(w, trg, num_segments=N).reshape(N, HF)
    out = out + skip + params["bias"].reshape(1, HF).astype(f32)
    return jnp.where(out > 0, out, jnp.expm1(out))


# --------------------------------- demo ---------------------------------------
def _make_params(key, F_in, F_out, NH, with_skip):
    HF = NH * F_out
    k_wp, k_ws, k_as, k_at = jax.random.split(key, 4)
    b_wp = (6.0 / (F_in + HF)) ** 0.5
    Wp = jax.random.uniform(k_wp, (F_in, HF), jnp.float32, -b_wp, b_wp)
    b_sc = (6.0 / (NH * F_out + F_out)) ** 0.5
    a_src = jax.random.uniform(k_as, (1, NH, F_out), jnp.float32, -b_sc, b_sc)
    a_trg = jax.random.uniform(k_at, (1, NH, F_out), jnp.float32, -b_sc, b_sc)
    params = {"Wp": Wp, "a_src": a_src, "a_trg": a_trg,
              "bias": jnp.zeros((HF,), jnp.float32)}
    if with_skip:
        b_sk = 1.0 / (F_in ** 0.5)
        params["Wskip"] = jax.random.uniform(k_ws, (F_in, HF), jnp.float32,
                                             -b_sk, b_sk)
    return params


def _ring_graph(N):
    nodes = jnp.arange(N, dtype=jnp.int32)
    src = jnp.concatenate([nodes, nodes, (nodes + 1) % N])
    trg = jnp.concatenate([nodes, (nodes + 1) % N, nodes])
    return jnp.stack([src, trg], axis=0)        # (2, 3N) self loops + ring


def _run_case(key, N, F_in, F_out, NH, **tiles):
    k_x, k_p = jax.random.split(key)
    params = _make_params(k_p, F_in, F_out, NH, with_skip=(F_in != F_out))
    edge_index = _ring_graph(N)
    x = jax.random.normal(k_x, (N, F_in), jnp.float32)

    out, _ = gat_layer_imp3(x, edge_index, params, NH, F_out, **tiles)
    out = jax.block_until_ready(out)
    assert out.shape == (N, NH * F_out)

    # check vs a reference that matches the kernel's bf16-operand matmuls
    ref_m = gat_reference(x, edge_index, params, NH, F_out,
                          match_kernel_precision=True)
    assert jnp.allclose(out, ref_m, rtol=2e-2, atol=2e-2), (
        f"max abs err vs bf16-matched ref {jnp.max(jnp.abs(out - ref_m))}")
    # looser sanity check vs the pure-f32 reference (bf16 only in matmul ops)
    ref_f = gat_reference(x, edge_index, params, NH, F_out)
    assert jnp.allclose(out, ref_f, rtol=7e-2, atol=7e-2), (
        f"max abs err vs f32 ref {jnp.max(jnp.abs(out - ref_f))}")


if __name__ == "__main__":
    key = jax.random.PRNGKey(0)
    k1, k2 = jax.random.split(key)
    # case 1: projected-skip path (F_in != F_out); default (large) tiles ->
    #         single node / single edge grid step at toy size.
    _run_case(k1, N=8, F_in=16, F_out=8, NH=4)
    # case 2: identity-skip path (F_in == F_out); small tile overrides to
    #         exercise multi-step node grid and cross-tile edge accumulation.
    _run_case(k2, N=16, F_in=8, F_out=8, NH=4, node_tile=8, edge_tile=16)
    print("KERNEL_OK")
</pallas_src>

<mosaic_0001>
module attributes {stable_mosaic.version = 11 : i64} {
  func.func @_node_table_kernel(%arg0: i32, %arg1: memref<8x16xf32, #tpu.memory_space<vmem>>, %arg2: memref<16x512xbf16, #tpu.memory_space<vmem>>, %arg3: memref<8x512xf32, #tpu.memory_space<vmem>>) attributes {dimension_semantics = [#tpu.dimension_semantics<parallel>], iteration_bounds = array<i64: 1>, scalar_prefetch = 0 : i64, scratch_operands = 0 : i64, tpu.core_type = #tpu.core_type<tc>, window_params = [{transform_indices = @transform_0, window_bounds = array<i64: 8, 16>}, {pipeline_mode = #tpu.pipeline_mode<synchronous>, transform_indices = @transform_1, window_bounds = array<i64: 16, 512>}, {transform_indices = @transform_2, window_bounds = array<i64: 8, 512>}]} {
    %c0 = arith.constant 0 : index
    %c0_0 = arith.constant 0 : index
    %0 = vector.load %arg1[%c0, %c0_0] : memref<8x16xf32, #tpu.memory_space<vmem>>, vector<8x16xf32>
    %1 = arith.truncf %0 : vector<8x16xf32> to vector<8x16xbf16>
    %c0_1 = arith.constant 0 : index
    %c0_2 = arith.constant 0 : index
    %2 = vector.load %arg2[%c0_1, %c0_2] : memref<16x512xbf16, #tpu.memory_space<vmem>>, vector<16x512xbf16>
    %cst = arith.constant dense<0.000000e+00> : vector<8x512xf32>
    %3 = tpu.matmul %1, %2, %cst {dimension_numbers = #tpu.dot_dimension_numbers<[1], [0], [0], [1], [0, 0, 1, 1], [], []>} : vector<8x16xbf16>, vector<16x512xbf16>, vector<8x512xf32> -> vector<8x512xf32>
    %c0_3 = arith.constant 0 : index
    %c0_4 = arith.constant 0 : index
    %4 = vector.load %arg3[%c0_3, %c0_4] : memref<8x512xf32, #tpu.memory_space<vmem>>, vector<8x512xf32>
    tpu.vector_store %arg3[%c0_3, %c0_4], %3 {strides = array<i32>} : memref<8x512xf32, #tpu.memory_space<vmem>>, vector<8x512xf32>,
    return
  }
  func.func @transform_0(%arg0: i32) -> (i32, i32) {
    %c0_i32 = arith.constant 0 : i32
    %c0_i32_0 = arith.constant 0 : i32
    return %arg0, %c0_i32 : i32, i32
  }
  func.func @transform_1(%arg0: i32) -> (i32, i32) {
    %c0_i32 = arith.constant 0 : i32
    %c0_i32_0 = arith.constant 0 : i32
    %c0_i32_1 = arith.constant 0 : i32
    return %c0_i32, %c0_i32_0 : i32, i32
  }
  func.func @transform_2(%arg0: i32) -> (i32, i32) {
    %c0_i32 = arith.constant 0 : i32
    %c0_i32_0 = arith.constant 0 : i32
    return %arg0, %c0_i32 : i32, i32
  }
}

</mosaic_0001>

<llo_original>
// kernel: tpu_custom_call.1
$region0: #{tpu_custom_call.1}
  #allocation0 [shape = 'u32[]', space=smem, size = 0x4, offset = 0x4, fixed_abs, tag = 'smem constant byte address 0x4 - core index']
  #allocation1 [shape = 'u32[144,128]{1,0:T(1,128)}', space=vmem, size = 0x12000, scoped, tag = 'internal scratch']
  %s0 = inlined_call_operand.hbm [shape: f32[8,16], index: 0, kind: input, shape index: {}]
  %s1 = inlined_call_operand.hbm [shape: bf16[16,512], index: 1, kind: input, shape index: {}]
  %s2 = inlined_call_operand.hbm [shape: f32[8,512], index: 2, kind: output, shape index: {}]
  %s3 = sld [smem:[#allocation0]]
  $region26: #{tpu_custom_call.1} parent=0
    _
  %s5 = ssub.s32 1, %s3
  %s6 = scalar_select 0, %s5, %s3
  $region1: #{tpu_custom_call.1} parent=0
    #allocation2 [shape = 'u8[4096]{0}', space=vmem, size = 0x1000, scoped, tag = 'input window, operand 0, single buffered']
    #allocation3 [shape = 's32[1]{0}', space=sflag, size = 0x4, scoped, tag = 'scoped memory for tpu_custom_call.1']
    #allocation4 [shape = 's32[1]{0}', space=sflag, size = 0x4, scoped, tag = 'scoped memory for tpu_custom_call.1']
    #allocation5 [shape = 'u8[16384]{0}', space=vmem, size = 0x4000, scoped, tag = 'input window, operand 1, single buffered']
    #allocation6 [shape = 's32[1]{0}', space=sflag, size = 0x4, scoped, tag = 'scoped memory for tpu_custom_call.1']
    #allocation7 [shape = 'u8[16384]{0}', space=vmem, size = 0x4000, scoped, tag = 'output window, operand 0, single buffered']
    %7 = vsyncpa [#allocation3], 0
    %8 = vsyncpa [#allocation6], 0
    %9 = vsyncpa [#allocation4], 0
    // Predicated region
    $region2: #{tpu_custom_call.1} parent=1 // pred_check
      _
    $region3: #{tpu_custom_call.1} parent=1 // pred_check_branch
      %11 = sbr.rel (0) target = $region5
    $region4: #{tpu_custom_call.1} parent=1 // pred_region
      %s13 = ssub.s32 128, 128
      %14 = vsyncadd [#allocation3], %s13
      %s16 = sshll.u32 [#allocation2], 4
      %s17 = int_to_ptr.vmem [resolvable:$true] %s16
      %19 = dma.hbm_to_vmem [thread:$0]  %s0, 128, %s17, [#allocation3]
    $region5: #{tpu_custom_call.1} parent=1 // pred_fallthru
      _
    // Predicated region
    $region6: #{tpu_custom_call.1} parent=1 // pred_check
      _
    $region7: #{tpu_custom_call.1} parent=1 // pred_check_branch
      %21 = sbr.rel (0) target = $region9
    $region8: #{tpu_custom_call.1} parent=1 // pred_region
      %s23 = ssub.s32 512, 512
      %24 = vsyncadd [#allocation6], %s23
      %s25 = sshll.u32 [#allocation5], 4
      %s26 = int_to_ptr.vmem [resolvable:$true] %s25
      %31 = dma.hbm_to_vmem [thread:$0]  %s1, 512, %s26, [#allocation6], 256, 256, 16
    $region9: #{tpu_custom_call.1} parent=1 // pred_fallthru
      _
    // Predicated region
    $region10: #{tpu_custom_call.1} parent=1 // pred_check
      _
    $region11: #{tpu_custom_call.1} parent=1 // pred_check_branch
      %33 = sbr.rel (0) target = $region13
    $region12: #{tpu_custom_call.1} parent=1 // pred_region
      %34 = dma.done [#allocation3], 128
    $region13: #{tpu_custom_call.1} parent=1 // pred_fallthru
      _
    // Predicated region
    $region14: #{tpu_custom_call.1} parent=1 // pred_check
      _
    $region15: #{tpu_custom_call.1} parent=1 // pred_check_branch
      %36 = sbr.rel (0) target = $region17
    $region16: #{tpu_custom_call.1} parent=1 // pred_region
      %37 = dma.done [#allocation6], 512
    $region17: #{tpu_custom_call.1} parent=1 // pred_fallthru
      _
    %v39 = vld [vmem:[#allocation2] sm:$0xff]
    %v40 = vpack.c.bf16 %v39, %v39
    %v41 = vld [vmem:[#allocation5] sm:$0xff]
    %v42 = vld [vmem:[#allocation5 + $0x8] sm:$0xff]
    %v43 = vld [vmem:[#allocation5 + $0x10] sm:$0xff]
    %v44 = vld [vmem:[#allocation5 + $0x18] sm:$0xff]
    %v49 = vunpack.c.l.b16 %v41
    %v50 = vunpack.c.h.b16 %v41
    %v51 = vunpack.c.l.b16 %v42
    %v52 = vunpack.c.h.b16 %v42
    %v53 = vunpack.c.l.b16 %v43
    %v54 = vunpack.c.h.b16 %v43
    %v55 = vunpack.c.l.b16 %v44
    %v56 = vunpack.c.h.b16 %v44
    %v57 = vpack.c.b16 %v53, %v49
    %v58 = vpack.c.b16 %v54, %v50
    %v59 = vpack.c.b16 %v55, %v51
    %v60 = vpack.c.b16 %v56, %v52
    %vm65 = vcmask 130048
    %v67 = vsel %vm65, %v40, 0
    %69 = vmatprep.subr.bf16.mxu0 %v58
    %70 = vmatpush1.bf16.msra.mxu0 %v57
    %71 = vmatprep.subr.bf16.mxu0 0
    %72 = vmatpush1.bf16.msra.mxu0 0
    %73 = vmatprep.subr.bf16.mxu0 0
    %74 = vmatpush1.bf16.msra.mxu0 0
    %75 = vmatprep.subr.bf16.mxu0 0
    %76 = vmatpush1.bf16.msra.mxu0 0
    %77 = vmatprep.subr.bf16.mxu0 0
    %78 = vmatpush1.bf16.msra.mxu0 0
    %79 = vmatprep.subr.bf16.mxu0 0
    %80 = vmatpush1.bf16.msra.mxu0 0
    %81 = vmatprep.subr.bf16.mxu0 0
    %82 = vmatpush1.bf16.msra.mxu0 0
    %83 = vmatprep.subr.bf16.mxu0 0
    %84 = vmatpush1.bf16.msra.mxu0 0
    %85 = vmatprep.subr.bf16.mxu0 0
    %86 = vmatpush1.bf16.msra.mxu0 0
    %87 = vmatprep.subr.bf16.mxu0 0
    %88 = vmatpush1.bf16.msra.mxu0 0
    %89 = vmatprep.subr.bf16.mxu0 0
    %90 = vmatpush1.bf16.msra.mxu0 0
    %91 = vmatprep.subr.bf16.mxu0 0
    %92 = vmatpush1.bf16.msra.mxu0 0
    %93 = vmatprep.subr.bf16.mxu0 0
    %94 = vmatpush1.bf16.msra.mxu0 0
    %95 = vmatprep.subr.bf16.mxu0 0
    %96 = vmatpush1.bf16.msra.mxu0 0
    %97 = vmatprep.subr.bf16.mxu0 0
    %98 = vmatpush1.bf16.msra.mxu0 0
    %99 = vmatprep.subr.bf16.mxu0 0
    %100 = vmatpush1.bf16.msra.mxu0 0
    %101 = vmatprep.mubr.bf16.mxu0 0
    %102 = vmatmul.mubr.bf16.gmra.mrb[0].mxu0 %v67
    %v103 = vpop.f32.mrb[0].mxu0
    %v104 = vadd.f32 0.0, %v103
    %v105 = vpop.f32.mrb[0].mxu0
    %v106 = vadd.f32 0.0, %v105
    %v107 = vpop.f32.mrb[0].mxu0
    %v108 = vpop.f32.mrb[0].mxu0
    %109 = vdwg.mxu0
    %110 = vmatprep.subr.bf16.mxu0 %v60
    %111 = vmatpush1.bf16.msra.mxu0 %v59
    %112 = vmatprep.subr.bf16.mxu0 0
    %113 = vmatpush1.bf16.msra.mxu0 0
    %114 = vmatprep.subr.bf16.mxu0 0
    %115 = vmatpush1.bf16.msra.mxu0 0
    %116 = vmatprep.subr.bf16.mxu0 0
    %117 = vmatpush1.bf16.msra.mxu0 0
    %118 = vmatprep.subr.bf16.mxu0 0
    %119 = vmatpush1.bf16.msra.mxu0 0
    %120 = vmatprep.subr.bf16.mxu0 0
    %121 = vmatpush1.bf16.msra.mxu0 0
    %122 = vmatprep.subr.bf16.mxu0 0
    %123 = vmatpush1.bf16.msra.mxu0 0
    %124 = vmatprep.subr.bf16.mxu0 0
    %125 = vmatpush1.bf16.msra.mxu0 0
    %126 = vmatprep.subr.bf16.mxu0 0
    %127 = vmatpush1.bf16.msra.mxu0 0
    %128 = vmatprep.subr.bf16.mxu0 0
    %129 = vmatpush1.bf16.msra.mxu0 0
    %130 = vmatprep.subr.bf16.mxu0 0
    %131 = vmatpush1.bf16.msra.mxu0 0
    %132 = vmatprep.subr.bf16.mxu0 0
    %133 = vmatpush1.bf16.msra.mxu0 0
    %134 = vmatprep.subr.bf16.mxu0 0
    %135 = vmatpush1.bf16.msra.mxu0 0
    %136 = vmatprep.subr.bf16.mxu0 0
    %137 = vmatpush1.bf16.msra.mxu0 0
    %138 = vmatprep.subr.bf16.mxu0 0
    %139 = vmatpush1.bf16.msra.mxu0 0
    %140 = vmatprep.subr.bf16.mxu0 0
    %141 = vmatpush1.bf16.msra.mxu0 0
    %142 = vmatprep.mubr.bf16.mxu0 0
    %143 = vmatmul.mubr.bf16.gmra.mrb[0].mxu0 %v67
    %v144 = vpop.f32.mrb[0].mxu0
    %v145 = vadd.f32 0.0, %v144
    %v146 = vpop.f32.mrb[0].mxu0
    %v147 = vadd.f32 0.0, %v146
    %v148 = vpop.f32.mrb[0].mxu0
    %v149 = vpop.f32.mrb[0].mxu0
    %150 = vdwg.mxu0
    %151 = vst [vmem:[#allocation7] sm:$0xff] %v104
    %152 = vst [vmem:[#allocation7 + $0x8] sm:$0xff] %v106
    %153 = vst [vmem:[#allocation7 + $0x10] sm:$0xff] %v145
    %154 = vst [vmem:[#allocation7 + $0x18] sm:$0xff] %v147
    // Predicated region
    $region18: #{tpu_custom_call.1} parent=1 // pred_check
      _
    $region19: #{tpu_custom_call.1} parent=1 // pred_check_branch
      %156 = sbr.rel (0) target = $region21
    $region20: #{tpu_custom_call.1} parent=1 // pred_region
      %s158 = ssub.s32 512, 512
      %159 = vsyncadd [#allocation4], %s158
      %s161 = sshll.u32 [#allocation7], 4
      %s162 = int_to_ptr.vmem [resolvable:$true] %s161
      %164 = dma.vmem_to_hbm [thread:$0]  %s162, 512, %s2, [#allocation4]
    $region21: #{tpu_custom_call.1} parent=1 // pred_fallthru
      _
    // Predicated region
    $region22: #{tpu_custom_call.1} parent=1 // pred_check
      _
    $region23: #{tpu_custom_call.1} parent=1 // pred_check_branch
      %166 = sbr.rel (0) target = $region25
    $region24: #{tpu_custom_call.1} parent=1 // pred_region
      %167 = dma.done [#allocation4], 512
    $region25: #{tpu_custom_call.1} parent=1 // pred_fallthru
      _
    %168 = vsyncpa [#allocation3], 1
    %169 = vsyncpa [#allocation6], 1
    %170 = vsyncpa [#allocation4], 1

</llo_original>
